<compile_context>
chip_gen: v6e
topology: v6e:2x2x1
jax: 0.10.0
libtpu: 0.0.40
codegen_flags: <defaults>
</compile_context>

<pallas_src>
import functools

import jax
import jax.numpy as jnp
from jax import lax
from jax.experimental import pallas as pl
from jax.experimental.pallas import tpu as pltpu


_LANE = 128
# Conservative VMEM budget: fits v7x's 64 MiB physical VMEM with headroom for
# compiler scratch; v5e / v6e have 128 MiB so this is safe on every generation.
_VMEM_BUDGET_BYTES = 40 * 1024 * 1024


def _round_up(v, m):
    return ((v + m - 1) // m) * m


def _bn_relu_epilogue(y, gamma, beta, *, eps, inv_n):
    """Fused training-mode BatchNorm1d + ReLU (single reduction pass)."""
    s = jnp.sum(y, axis=0, keepdims=True)              # (1, tO)
    ss = jnp.sum(y * y, axis=0, keepdims=True)          # (1, tO)
    mean = s * inv_n
    var = jnp.maximum(ss * inv_n - mean * mean, 0.0)     # biased variance
    scale = gamma * lax.rsqrt(var + eps)                 # rsqrt -> EUP slot
    shift = beta - mean * scale
    return jnp.maximum(y * scale + shift, 0.0)


def _linear_bn_relu(x, w, gamma, beta, *, eps, inv_n):
    # Linear without bias (bias is exactly cancelled by the BN mean subtraction).
    # Weight stays in native PyTorch (O, I) layout; contract dim 1 of x with
    # dim 1 of w on the MXU -- no transposed weight copy is materialized.
    y = lax.dot_general(
        x, w,
        dimension_numbers=(((1,), (1,)), ((), ())),
        preferred_element_type=jnp.float32,
    )
    return _bn_relu_epilogue(y, gamma, beta, eps=eps, inv_n=inv_n)


def _act_kernel(x_ref, w_ref, g_ref, b_ref, out_ref, *, eps, inv_n):
    """Mode B: emit only the (N, tO) activation tile (lane-dense store)."""
    act = _linear_bn_relu(x_ref[...], w_ref[...], g_ref[...], b_ref[...],
                          eps=eps, inv_n=inv_n)
    out_ref[...] = act.astype(out_ref.dtype)


def _fused_concat_kernel(x_ref, w_ref, g_ref, b_ref, out_ref, *,
                         eps, inv_n, t_o, o, i):
    """Mode A: write act tiles and the x passthrough into one (N, O+I) output.

    The output block index is constant across the grid, so the block stays
    resident in VMEM; step j fills columns [j*tO, (j+1)*tO) and step 0 also
    copies x into columns [O, O+I). This removes the wrapper concatenate and
    its extra HBM read/write pass over both halves.
    """
    j = pl.program_id(0)
    x = x_ref[...]
    act = _linear_bn_relu(x, w_ref[...], g_ref[...], b_ref[...],
                          eps=eps, inv_n=inv_n)
    col = pl.multiple_of(j * t_o, _LANE)
    out_ref[:, pl.ds(col, t_o)] = act.astype(out_ref.dtype)

    @pl.when(j == 0)
    def _():
        out_ref[:, pl.ds(o, i)] = x.astype(out_ref.dtype)


def _vmem_estimate_bytes(n, i, o_pad, t_o, *, fused, o, x_bufs=2):
    elems = x_bufs * n * i          # x block(s), full batch resident
    elems += 2 * t_o * i            # double-buffered weight tiles
    elems += 2 * 2 * t_o            # gamma / beta tiles (tiny)
    if fused:
        elems += 2 * n * (o + i)    # resident concat output (conservative 2x)
    else:
        elems += 2 * n * t_o        # double-buffered activation tiles
    return 4 * elems                # f32


def _pick_o_tile(n, i, o_pad):
    cands = [c for c in (512, 256, 128) if c <= o_pad and o_pad % c == 0]
    if not cands:
        cands = [o_pad]
    # Prefer >=2 grid steps so the "parallel" O axis can shard across v7x's
    # two TensorCores (no effect on single-TC v5e/v6e).
    if o_pad >= 2 * _LANE:
        multi = [c for c in cands if o_pad // c >= 2]
        if multi:
            cands = multi
    for c in cands:
        if _vmem_estimate_bytes(n, i, o_pad, c, fused=False, o=o_pad) <= _VMEM_BUDGET_BYTES:
            return c
    return cands[-1]


def residual_forward(x, w, b=None, gamma=None, beta=None, *, eps=1e-5):
    """Forward pass of the PyTorch `Residual` module.

    x:     (N, I) float32 batch
    w:     (O, I) Linear weight, native PyTorch layout
    b:     (O,)   Linear bias -- accepted for API parity but unused: in
                  training-mode BatchNorm the mean subtraction cancels a
                  per-feature additive bias exactly (dead math).
    gamma: (O,)   BatchNorm1d weight;  beta: (O,) BatchNorm1d bias
    Returns (N, O + I) = cat([relu(bn(linear(x))), x], dim=1).

    NOTE: the exact training-mode BN statistics rely on the batch dim N never
    being tiled -- do not add an N grid axis without switching to two-pass BN.
    """
    del b  # exactly cancelled by BN mean subtraction
    n, i = x.shape
    o = w.shape[0]
    if gamma is None:
        gamma = jnp.ones((o,), dtype=jnp.float32)
    if beta is None:
        beta = jnp.zeros((o,), dtype=jnp.float32)

    # Pad the output-feature dim to a lane multiple so every activation store
    # is an unmasked, lane-dense vst.
    o_pad = max(_round_up(o, _LANE), _LANE)
    if o_pad != o:
        w_k = jnp.pad(w, ((0, o_pad - o), (0, 0)))
        g_k = jnp.pad(gamma, (0, o_pad - o), constant_values=1.0)
        be_k = jnp.pad(beta, (0, o_pad - o))
    else:
        w_k, g_k, be_k = w, gamma, beta
    g_k = g_k.reshape(1, o_pad).astype(jnp.float32)
    be_k = be_k.reshape(1, o_pad).astype(jnp.float32)

    t_o = _pick_o_tile(n, i, o_pad)
    grid = (o_pad // t_o,)
    inv_n = 1.0 / float(n)

    # Fold the concat into the kernel when O is lane aligned and the resident
    # (N, O+I) output fits the VMEM budget; otherwise emit the padded
    # activation only and concatenate in the wrapper (pure passthrough of x).
    fused = (o_pad == o) and (
        _vmem_estimate_bytes(n, i, o_pad, t_o, fused=True, o=o) <= _VMEM_BUDGET_BYTES)

    est = _vmem_estimate_bytes(n, i, o_pad, t_o, fused=fused, o=o)
    vmem_limit = int(min(56 * 1024 * 1024, max(est + (8 << 20), 32 << 20)))

    def _build(single_buffer_x):
        x_kwargs = {}
        if single_buffer_x and hasattr(pl, "Buffered"):
            # x's index_map is constant -> DMA'd once; one buffer suffices.
            x_kwargs = dict(pipeline_mode=pl.Buffered(1))
        in_specs = [
            pl.BlockSpec((n, i), lambda j: (0, 0), **x_kwargs),   # x: full batch
            pl.BlockSpec((t_o, i), lambda j: (j, 0)),             # w: O-tile, (O, I)
            pl.BlockSpec((1, t_o), lambda j: (0, j)),             # gamma
            pl.BlockSpec((1, t_o), lambda j: (0, j)),             # beta
        ]
        if fused:
            kernel = functools.partial(_fused_concat_kernel, eps=eps, inv_n=inv_n,
                                       t_o=t_o, o=o, i=i)
            out_shape = jax.ShapeDtypeStruct((n, o + i), x.dtype)
            out_specs = pl.BlockSpec((n, o + i), lambda j: (0, 0))
            # The output block is revisited every step -> axis must be arbitrary.
            semantics = ("arbitrary",)
        else:
            kernel = functools.partial(_act_kernel, eps=eps, inv_n=inv_n)
            out_shape = jax.ShapeDtypeStruct((n, o_pad), x.dtype)
            out_specs = pl.BlockSpec((n, t_o), lambda j: (0, j))
            semantics = ("parallel",)
        return pl.pallas_call(
            kernel,
            out_shape=out_shape,
            grid_spec=pl.GridSpec(grid=grid, in_specs=in_specs, out_specs=out_specs),
            compiler_params=pltpu.CompilerParams(
                dimension_semantics=semantics,
                vmem_limit_bytes=vmem_limit),
        )

    try:
        out = _build(single_buffer_x=True)(x, w_k, g_k, be_k)
    except Exception:
        # pipeline_mode=Buffered(1) unsupported in this Pallas build; fall back
        # to default double-buffering (identical results, slightly more VMEM).
        out = _build(single_buffer_x=False)(x, w_k, g_k, be_k)

    if fused:
        return out
    # x is a pure passthrough; concat outside the kernel (padded path only).
    return jnp.concatenate([out[:, :o], x], axis=1)


if __name__ == "__main__":
    key = jax.random.PRNGKey(0)

    def _reference(x, w, b, gamma, beta, eps=1e-5):
        y = x @ w.T + b
        mu = y.mean(axis=0, keepdims=True)
        va = ((y - mu) ** 2).mean(axis=0, keepdims=True)
        act = jnp.maximum(gamma * (y - mu) / jnp.sqrt(va + eps) + beta, 0.0)
        return jnp.concatenate([act, x], axis=1)

    def _run_case(case_key, n, i, o):
        kx, kw, kb = jax.random.split(case_key, 3)
        x = jax.random.normal(kx, (n, i), dtype=jnp.float32)
        bound = 1.0 / jnp.sqrt(jnp.float32(i))
        w = jax.random.uniform(kw, (o, i), dtype=jnp.float32,
                               minval=-bound, maxval=bound)
        b = jax.random.uniform(kb, (o,), dtype=jnp.float32,
                               minval=-bound, maxval=bound)
        gamma = jnp.ones((o,), dtype=jnp.float32)   # BatchNorm1d default weight
        beta = jnp.zeros((o,), dtype=jnp.float32)   # BatchNorm1d default bias

        out = residual_forward(x, w, b, gamma, beta)
        jax.block_until_ready(out)

        ref = _reference(x, w, b, gamma, beta)
        assert out.shape == (n, o + i)
        assert jnp.allclose(out, ref, atol=5e-5, rtol=5e-5), (
            "max abs err = %f" % float(jnp.max(jnp.abs(out - ref))))

    k1, k2 = jax.random.split(key)
    # Case 1: module-default small shapes; O=32 not lane aligned -> padded path.
    _run_case(k1, 8, 32, 32)
    # Case 2: lane-aligned O -> fused in-kernel concat path with 2 O-tiles.
    _run_case(k2, 8, 32, 256)

    print("KERNEL_OK")
</pallas_src>

<mosaic_0001>
module attributes {stable_mosaic.version = 11 : i64} {
  func.func @_act_kernel(%arg0: i32, %arg1: memref<8x32xf32, #tpu.memory_space<vmem>>, %arg2: memref<128x32xf32, #tpu.memory_space<vmem>>, %arg3: memref<1x128xf32, #tpu.memory_space<vmem>>, %arg4: memref<1x128xf32, #tpu.memory_space<vmem>>, %arg5: memref<8x128xf32, #tpu.memory_space<vmem>>) attributes {dimension_semantics = [#tpu.dimension_semantics<parallel>], iteration_bounds = array<i64: 1>, scalar_prefetch = 0 : i64, scratch_operands = 0 : i64, tpu.core_type = #tpu.core_type<tc>, window_params = [{pipeline_mode = #tpu.pipeline_mode<synchronous>, transform_indices = @transform_0, window_bounds = array<i64: 8, 32>}, {transform_indices = @transform_1, window_bounds = array<i64: 128, 32>}, {transform_indices = @transform_2, window_bounds = array<i64: 1, 128>}, {transform_indices = @transform_3, window_bounds = array<i64: 1, 128>}, {transform_indices = @transform_4, window_bounds = array<i64: 8, 128>}]} {
    %c0 = arith.constant 0 : index
    %c0_0 = arith.constant 0 : index
    %0 = vector.load %arg1[%c0, %c0_0] : memref<8x32xf32, #tpu.memory_space<vmem>>, vector<8x32xf32>
    %c0_1 = arith.constant 0 : index
    %c0_2 = arith.constant 0 : index
    %1 = vector.load %arg2[%c0_1, %c0_2] : memref<128x32xf32, #tpu.memory_space<vmem>>, vector<128x32xf32>
    %c0_3 = arith.constant 0 : index
    %c0_4 = arith.constant 0 : index
    %2 = vector.load %arg3[%c0_3, %c0_4] : memref<1x128xf32, #tpu.memory_space<vmem>>, vector<1x128xf32>
    %c0_5 = arith.constant 0 : index
    %c0_6 = arith.constant 0 : index
    %3 = vector.load %arg4[%c0_5, %c0_6] : memref<1x128xf32, #tpu.memory_space<vmem>>, vector<1x128xf32>
    %cst = arith.constant dense<0.000000e+00> : vector<8x128xf32>
    %4 = tpu.matmul %0, %1, %cst {dimension_numbers = #tpu.dot_dimension_numbers<[1], [1], [0], [0], [0, 0, 1, 0], [], []>} : vector<8x32xf32>, vector<128x32xf32>, vector<8x128xf32> -> vector<8x128xf32>
    %cst_7 = arith.constant dense<0.000000e+00> : vector<128xf32>
    %5 = vector.multi_reduction <add>, %4, %cst_7 [0] : vector<8x128xf32> to vector<128xf32>
    %6 = vector.shape_cast %5 : vector<128xf32> to vector<1x128xf32>
    %7 = arith.mulf %4, %4 : vector<8x128xf32>
    %cst_8 = arith.constant dense<0.000000e+00> : vector<128xf32>
    %8 = vector.multi_reduction <add>, %7, %cst_8 [0] : vector<8x128xf32> to vector<128xf32>
    %9 = vector.shape_cast %8 : vector<128xf32> to vector<1x128xf32>
    %cst_9 = arith.constant 1.250000e-01 : f32
    %10 = vector.broadcast %cst_9 : f32 to vector<1x128xf32>
    %11 = arith.mulf %6, %10 : vector<1x128xf32>
    %cst_10 = arith.constant 1.250000e-01 : f32
    %12 = vector.broadcast %cst_10 : f32 to vector<1x128xf32>
    %13 = arith.mulf %9, %12 : vector<1x128xf32>
    %14 = arith.mulf %11, %11 : vector<1x128xf32>
    %15 = arith.subf %13, %14 : vector<1x128xf32>
    %cst_11 = arith.constant 0.000000e+00 : f32
    %16 = vector.broadcast %cst_11 : f32 to vector<1x128xf32>
    %17 = arith.maximumf %15, %16 : vector<1x128xf32>
    %cst_12 = arith.constant 9.99999974E-6 : f32
    %18 = vector.broadcast %cst_12 : f32 to vector<1x128xf32>
    %19 = arith.addf %17, %18 : vector<1x128xf32>
    %20 = math.rsqrt %19 : vector<1x128xf32>
    %21 = arith.mulf %2, %20 : vector<1x128xf32>
    %22 = arith.mulf %11, %21 : vector<1x128xf32>
    %23 = arith.subf %3, %22 : vector<1x128xf32>
    %24 = vector.broadcast %21 : vector<1x128xf32> to vector<8x128xf32>
    %25 = arith.mulf %4, %24 : vector<8x128xf32>
    %26 = vector.broadcast %23 : vector<1x128xf32> to vector<8x128xf32>
    %27 = arith.addf %25, %26 : vector<8x128xf32>
    %cst_13 = arith.constant 0.000000e+00 : f32
    %28 = vector.broadcast %cst_13 : f32 to vector<8x128xf32>
    %29 = arith.maximumf %27, %28 : vector<8x128xf32>
    %c0_14 = arith.constant 0 : index
    %c0_15 = arith.constant 0 : index
    %30 = vector.load %arg5[%c0_14, %c0_15] : memref<8x128xf32, #tpu.memory_space<vmem>>, vector<8x128xf32>
    tpu.vector_store %arg5[%c0_14, %c0_15], %29 {strides = array<i32>} : memref<8x128xf32, #tpu.memory_space<vmem>>, vector<8x128xf32>,
    return
  }
  func.func @transform_0(%arg0: i32) -> (i32, i32) {
    %c0_i32 = arith.constant 0 : i32
    %c0_i32_0 = arith.constant 0 : i32
    %c0_i32_1 = arith.constant 0 : i32
    return %c0_i32, %c0_i32_0 : i32, i32
  }
  func.func @transform_1(%arg0: i32) -> (i32, i32) {
    %c0_i32 = arith.constant 0 : i32
    %c0_i32_0 = arith.constant 0 : i32
    return %arg0, %c0_i32 : i32, i32
  }
  func.func @transform_2(%arg0: i32) -> (i32, i32) {
    %c0_i32 = arith.constant 0 : i32
    %c0_i32_0 = arith.constant 0 : i32
    return %c0_i32, %arg0 : i32, i32
  }
  func.func @transform_3(%arg0: i32) -> (i32, i32) {
    %c0_i32 = arith.constant 0 : i32
    %c0_i32_0 = arith.constant 0 : i32
    return %c0_i32, %arg0 : i32, i32
  }
  func.func @transform_4(%arg0: i32) -> (i32, i32) {
    %c0_i32 = arith.constant 0 : i32
    %c0_i32_0 = arith.constant 0 : i32
    return %c0_i32, %arg0 : i32, i32
  }
}

module attributes {stable_mosaic.version = 11 : i64} {
  func.func @_act_kernel(%arg0: i32, %arg1: memref<8x32xf32, #tpu.memory_space<vmem>>, %arg2: memref<128x32xf32, #tpu.memory_space<vmem>>, %arg3: memref<1x128xf32, #tpu.memory_space<vmem>>, %arg4: memref<1x128xf32, #tpu.memory_space<vmem>>, %arg5: memref<8x128xf32, #tpu.memory_space<vmem>>) attributes {dimension_semantics = [#tpu.dimension_semantics<parallel>], iteration_bounds = array<i64: 1>, scalar_prefetch = 0 : i64, scratch_operands = 0 : i64, tpu.core_type = #tpu.core_type<tc>, window_params = [{pipeline_mode = #tpu.pipeline_mode<synchronous>, transform_indices = @transform_0, window_bounds = array<i64: 8, 32>}, {transform_indices = @transform_1, window_bounds = array<i64: 128, 32>}, {transform_indices = @transform_2, window_bounds = array<i64: 1, 128>}, {transform_indices = @transform_3, window_bounds = array<i64: 1, 128>}, {transform_indices = @transform_4, window_bounds = array<i64: 8, 128>}]} {
    %c0 = arith.constant 0 : index
    %c0_0 = arith.constant 0 : index
    %0 = vector.load %arg1[%c0, %c0_0] : memref<8x32xf32, #tpu.memory_space<vmem>>, vector<8x32xf32>
    %c0_1 = arith.constant 0 : index
    %c0_2 = arith.constant 0 : index
    %1 = vector.load %arg2[%c0_1, %c0_2] : memref<128x32xf32, #tpu.memory_space<vmem>>, vector<128x32xf32>
    %c0_3 = arith.constant 0 : index
    %c0_4 = arith.constant 0 : index
    %2 = vector.load %arg3[%c0_3, %c0_4] : memref<1x128xf32, #tpu.memory_space<vmem>>, vector<1x128xf32>
    %c0_5 = arith.constant 0 : index
    %c0_6 = arith.constant 0 : index
    %3 = vector.load %arg4[%c0_5, %c0_6] : memref<1x128xf32, #tpu.memory_space<vmem>>, vector<1x128xf32>
    %cst = arith.constant dense<0.000000e+00> : vector<8x128xf32>
    %4 = tpu.matmul %0, %1, %cst {dimension_numbers = #tpu.dot_dimension_numbers<[1], [1], [0], [0], [0, 0, 1, 0], [], []>} : vector<8x32xf32>, vector<128x32xf32>, vector<8x128xf32> -> vector<8x128xf32>
    %cst_7 = arith.constant dense<0.000000e+00> : vector<128xf32>
    %5 = vector.multi_reduction <add>, %4, %cst_7 [0] : vector<8x128xf32> to vector<128xf32>
    %6 = vector.shape_cast %5 : vector<128xf32> to vector<1x128xf32>
    %7 = arith.mulf %4, %4 : vector<8x128xf32>
    %cst_8 = arith.constant dense<0.000000e+00> : vector<128xf32>
    %8 = vector.multi_reduction <add>, %7, %cst_8 [0] : vector<8x128xf32> to vector<128xf32>
    %9 = vector.shape_cast %8 : vector<128xf32> to vector<1x128xf32>
    %cst_9 = arith.constant 1.250000e-01 : f32
    %10 = vector.broadcast %cst_9 : f32 to vector<1x128xf32>
    %11 = arith.mulf %6, %10 : vector<1x128xf32>
    %cst_10 = arith.constant 1.250000e-01 : f32
    %12 = vector.broadcast %cst_10 : f32 to vector<1x128xf32>
    %13 = arith.mulf %9, %12 : vector<1x128xf32>
    %14 = arith.mulf %11, %11 : vector<1x128xf32>
    %15 = arith.subf %13, %14 : vector<1x128xf32>
    %cst_11 = arith.constant 0.000000e+00 : f32
    %16 = vector.broadcast %cst_11 : f32 to vector<1x128xf32>
    %17 = arith.maximumf %15, %16 : vector<1x128xf32>
    %cst_12 = arith.constant 9.99999974E-6 : f32
    %18 = vector.broadcast %cst_12 : f32 to vector<1x128xf32>
    %19 = arith.addf %17, %18 : vector<1x128xf32>
    %20 = math.rsqrt %19 : vector<1x128xf32>
    %21 = arith.mulf %2, %20 : vector<1x128xf32>
    %22 = arith.mulf %11, %21 : vector<1x128xf32>
    %23 = arith.subf %3, %22 : vector<1x128xf32>
    %24 = vector.broadcast %21 : vector<1x128xf32> to vector<8x128xf32>
    %25 = arith.mulf %4, %24 : vector<8x128xf32>
    %26 = vector.broadcast %23 : vector<1x128xf32> to vector<8x128xf32>
    %27 = arith.addf %25, %26 : vector<8x128xf32>
    %cst_13 = arith.constant 0.000000e+00 : f32
    %28 = vector.broadcast %cst_13 : f32 to vector<8x128xf32>
    %29 = arith.maximumf %27, %28 : vector<8x128xf32>
    %c0_14 = arith.constant 0 : index
    %c0_15 = arith.constant 0 : index
    %30 = vector.load %arg5[%c0_14, %c0_15] : memref<8x128xf32, #tpu.memory_space<vmem>>, vector<8x128xf32>
    tpu.vector_store %arg5[%c0_14, %c0_15], %29 {strides = array<i32>} : memref<8x128xf32, #tpu.memory_space<vmem>>, vector<8x128xf32>,
    return
  }
  func.func @transform_0(%arg0: i32) -> (i32, i32) {
    %c0_i32 = arith.constant 0 : i32
    %c0_i32_0 = arith.constant 0 : i32
    %c0_i32_1 = arith.constant 0 : i32
    return %c0_i32, %c0_i32_0 : i32, i32
  }
  func.func @transform_1(%arg0: i32) -> (i32, i32) {
    %c0_i32 = arith.constant 0 : i32
    %c0_i32_0 = arith.constant 0 : i32
    return %arg0, %c0_i32 : i32, i32
  }
  func.func @transform_2(%arg0: i32) -> (i32, i32) {
    %c0_i32 = arith.constant 0 : i32
    %c0_i32_0 = arith.constant 0 : i32
    return %c0_i32, %arg0 : i32, i32
  }
  func.func @transform_3(%arg0: i32) -> (i32, i32) {
    %c0_i32 = arith.constant 0 : i32
    %c0_i32_0 = arith.constant 0 : i32
    return %c0_i32, %arg0 : i32, i32
  }
  func.func @transform_4(%arg0: i32) -> (i32, i32) {
    %c0_i32 = arith.constant 0 : i32
    %c0_i32_0 = arith.constant 0 : i32
    return %c0_i32, %arg0 : i32, i32
  }
}

</mosaic_0001>

<llo_original>
// kernel: tpu_custom_call.1
$region0: #{tpu_custom_call.1}
  #allocation0 [shape = 'u32[]', space=smem, size = 0x4, offset = 0x4, fixed_abs, tag = 'smem constant byte address 0x4 - core index']
  #allocation1 [shape = 'u32[144,128]{1,0:T(1,128)}', space=vmem, size = 0x12000, scoped, tag = 'internal scratch']
  %s0 = inlined_call_operand.vmem [shape: f32[8,32], index: 0, kind: input, shape index: {}]
  %s1 = inlined_call_operand.vmem [shape: f32[128,32], index: 1, kind: input, shape index: {}]
  %s2 = inlined_call_operand.vmem [shape: f32[1,128], index: 2, kind: input, shape index: {}]
  %s3 = inlined_call_operand.vmem [shape: f32[1,128], index: 3, kind: input, shape index: {}]
  %s4 = inlined_call_operand.hbm [shape: f32[8,128], index: 4, kind: output, shape index: {}]
  %s5 = sld [smem:[#allocation0]]
  $region26: #{tpu_custom_call.1} parent=0
    _
  %s7 = ssub.s32 1, %s5
  %s8 = scalar_select 0, %s7, %s5
  $region1: #{tpu_custom_call.1} parent=0
    #allocation2 [shape = 'u8[4096]{0}', space=vmem, size = 0x1000, scoped, tag = 'output window, operand 0, single buffered']
    #allocation3 [shape = 's32[1]{0}', space=sflag, size = 0x4, scoped, tag = 'scoped memory for tpu_custom_call.1']
    %9 = vsyncpa [#allocation3], 0
    // Predicated region
    $region2: #{tpu_custom_call.1} parent=1 // pred_check
      _
    $region3: #{tpu_custom_call.1} parent=1 // pred_check_branch
      %11 = sbr.rel (0) target = $region5
    $region4: #{tpu_custom_call.1} parent=1 // pred_region
      _
    $region5: #{tpu_custom_call.1} parent=1 // pred_fallthru
      _
    // Predicated region
    $region6: #{tpu_custom_call.1} parent=1 // pred_check
      _
    $region7: #{tpu_custom_call.1} parent=1 // pred_check_branch
      %13 = sbr.rel (0) target = $region9
    $region8: #{tpu_custom_call.1} parent=1 // pred_region
      _
    $region9: #{tpu_custom_call.1} parent=1 // pred_fallthru
      _
    // Predicated region
    $region10: #{tpu_custom_call.1} parent=1 // pred_check
      _
    $region11: #{tpu_custom_call.1} parent=1 // pred_check_branch
      %15 = sbr.rel (0) target = $region13
    $region12: #{tpu_custom_call.1} parent=1 // pred_region
      _
    $region13: #{tpu_custom_call.1} parent=1 // pred_fallthru
      _
    // Predicated region
    $region14: #{tpu_custom_call.1} parent=1 // pred_check
      _
    $region15: #{tpu_custom_call.1} parent=1 // pred_check_branch
      %17 = sbr.rel (0) target = $region17
    $region16: #{tpu_custom_call.1} parent=1 // pred_region
      _
    $region17: #{tpu_custom_call.1} parent=1 // pred_fallthru
      _
    %v18 = vld [vmem:[%s0] sm:$0xff]
    %v19 = vld [vmem:[%s1] sm:$0xff]
    %v20 = vld [vmem:[%s1 + $0x8] sm:$0xff]
    %v21 = vld [vmem:[%s1 + $0x10] sm:$0xff]
    %v22 = vld [vmem:[%s1 + $0x18] sm:$0xff]
    %v23 = vld [vmem:[%s1 + $0x20] sm:$0xff]
    %v24 = vld [vmem:[%s1 + $0x28] sm:$0xff]
    %v25 = vld [vmem:[%s1 + $0x30] sm:$0xff]
    %v26 = vld [vmem:[%s1 + $0x38] sm:$0xff]
    %v27 = vld [vmem:[%s1 + $0x40] sm:$0xff]
    %v28 = vld [vmem:[%s1 + $0x48] sm:$0xff]
    %v29 = vld [vmem:[%s1 + $0x50] sm:$0xff]
    %v30 = vld [vmem:[%s1 + $0x58] sm:$0xff]
    %v31 = vld [vmem:[%s1 + $0x60] sm:$0xff]
    %v32 = vld [vmem:[%s1 + $0x68] sm:$0xff]
    %v33 = vld [vmem:[%s1 + $0x70] sm:$0xff]
    %v34 = vld [vmem:[%s1 + $0x78] sm:$0xff]
    %v35 = vld [vmem:[%s2] sm:$0x1]
    %v36 = vld [vmem:[%s3] sm:$0x1]
    %vm37 = vcmask 261120
    %v39 = vsel %vm37, %v18, 0
    %v42 = vsel %vm37, %v19, 0
    %v45 = vsel %vm37, %v20, 0
    %v48 = vsel %vm37, %v21, 0
    %v51 = vsel %vm37, %v22, 0
    %v54 = vsel %vm37, %v23, 0
    %v57 = vsel %vm37, %v24, 0
    %v60 = vsel %vm37, %v25, 0
    %v63 = vsel %vm37, %v26, 0
    %v66 = vsel %vm37, %v27, 0
    %v69 = vsel %vm37, %v28, 0
    %v72 = vsel %vm37, %v29, 0
    %v75 = vsel %vm37, %v30, 0
    %v78 = vsel %vm37, %v31, 0
    %v81 = vsel %vm37, %v32, 0
    %v84 = vsel %vm37, %v33, 0
    %v87 = vsel %vm37, %v34, 0
    %89 = vmatprep.subr.mxu0 0.0
    %90 = vmatpush1.xpose.msra.mxu0 %v87
    %91 = vmatprep.subr.mxu0 0.0
    %92 = vmatpush1.xpose.msra.mxu0 %v84
    %93 = vmatprep.subr.mxu0 0.0
    %94 = vmatpush1.xpose.msra.mxu0 %v81
    %95 = vmatprep.subr.mxu0 0.0
    %96 = vmatpush1.xpose.msra.mxu0 %v78
    %97 = vmatprep.subr.mxu0 0.0
    %98 = vmatpush1.xpose.msra.mxu0 %v75
    %99 = vmatprep.subr.mxu0 0.0
    %100 = vmatpush1.xpose.msra.mxu0 %v72
    %101 = vmatprep.subr.mxu0 0.0
    %102 = vmatpush1.xpose.msra.mxu0 %v69
    %103 = vmatprep.subr.mxu0 0.0
    %104 = vmatpush1.xpose.msra.mxu0 %v66
    %105 = vmatprep.subr.mxu0 0.0
    %106 = vmatpush1.xpose.msra.mxu0 %v63
    %107 = vmatprep.subr.mxu0 0.0
    %108 = vmatpush1.xpose.msra.mxu0 %v60
    %109 = vmatprep.subr.mxu0 0.0
    %110 = vmatpush1.xpose.msra.mxu0 %v57
    %111 = vmatprep.subr.mxu0 0.0
    %112 = vmatpush1.xpose.msra.mxu0 %v54
    %113 = vmatprep.subr.mxu0 0.0
    %114 = vmatpush1.xpose.msra.mxu0 %v51
    %115 = vmatprep.subr.mxu0 0.0
    %116 = vmatpush1.xpose.msra.mxu0 %v48
    %117 = vmatprep.subr.mxu0 0.0
    %118 = vmatpush1.xpose.msra.mxu0 %v45
    %119 = vmatprep.subr.mxu0 0.0
    %120 = vmatpush1.xpose.msra.mxu0 %v42
    %121 = vmatprep.subr.mxu0 0.0
    %122 = vmatpush2.xpose.msra.mxu0 0.0
    %123 = vmatprep.subr.mxu0 0.0
    %124 = vmatpush2.xpose.msra.mxu0 0.0
    %125 = vmatprep.subr.mxu0 0.0
    %126 = vmatpush2.xpose.msra.mxu0 0.0
    %127 = vmatprep.subr.mxu0 0.0
    %128 = vmatpush2.xpose.msra.mxu0 0.0
    %129 = vmatprep.subr.mxu0 0.0
    %130 = vmatpush2.xpose.msra.mxu0 0.0
    %131 = vmatprep.subr.mxu0 0.0
    %132 = vmatpush2.xpose.msra.mxu0 0.0
    %133 = vmatprep.subr.mxu0 0.0
    %134 = vmatpush2.xpose.msra.mxu0 0.0
    %135 = vmatprep.subr.mxu0 0.0
    %136 = vmatpush2.xpose.msra.mxu0 0.0
    %137 = vmatprep.subr.mxu0 0.0
    %138 = vmatpush2.xpose.msra.mxu0 0.0
    %139 = vmatprep.subr.mxu0 0.0
    %140 = vmatpush2.xpose.msra.mxu0 0.0
    %141 = vmatprep.subr.mxu0 0.0
    %142 = vmatpush2.xpose.msra.mxu0 0.0
    %143 = vmatprep.subr.mxu0 0.0
    %144 = vmatpush2.xpose.msra.mxu0 0.0
    %145 = vmatprep.subr.mxu0 0.0
    %146 = vmatpush2.xpose.msra.mxu0 0.0
    %147 = vmatprep.subr.mxu0 0.0
    %148 = vmatpush2.xpose.msra.mxu0 0.0
    %149 = vmatprep.subr.mxu0 0.0
    %150 = vmatpush2.xpose.msra.mxu0 0.0
    %151 = vmatprep.subr.mxu0 0.0
    %152 = vmatpush2.xpose.msra.mxu0 0.0
    %153 = vmatprep.mubr.f32.mxu0 0.0
    %154 = vmatmul.mubr.f32.gmra.mxu0 %v39
    %v155 = vpop.f32.mrf.mxu0
    %v156 = vadd.f32 0.0, %v155
    %v157 = vpop.f32.mrf.mxu0
    %158 = vdwg.mxu0
    %v159 = vrot.slane %v156, 4
    %v160 = vadd.f32 %v156, %v159
    %v161 = vrot.slane %v160, 2
    %v162 = vadd.f32 %v160, %v161
    %v163 = vrot.slane %v162, 1
    %v164 = vadd.f32 %v162, %v163
    %v165 = vmul.f32 %v156, %v156
    %v166 = vrot.slane %v165, 4
    %v167 = vadd.f32 %v165, %v166
    %v168 = vrot.slane %v167, 2
    %v169 = vadd.f32 %v167, %v168
    %v170 = vrot.slane %v169, 1
    %v171 = vadd.f32 %v169, %v170
    %v172 = vmul.f32 %v164, 0.125
    %v173 = vmul.f32 %v171, 0.125
    %v174 = vmul.f32 %v172, %v172
    %v175 = vsub.f32 %v173, %v174
    %v176 = vmax.f32 %v175, 0.0
    %v177 = vadd.f32 %v176, 1e-05
    %v178 = vrsqrt.pop %v177
    %v179 = vmul.f32 %v35, %v178
    %v180 = vmul.f32 %v172, %v179
    %v181 = vsub.f32 %v36, %v180
    %v183 = vlaneseq
    %v184 = vshrl.u32 %v183, 7
    %v185 = vsub.s32 0, %v184
    %v186 = vrot.slane %v179, %v185
    %v188 = vmul.f32 %v156, %v186
    %v190 = vlaneseq
    %v191 = vshrl.u32 %v190, 7
    %v192 = vsub.s32 0, %v191
    %v193 = vrot.slane %v181, %v192
    %v195 = vadd.f32 %v188, %v193
    %v196 = vmax.f32 %v195, 0.0
    %197 = vst [vmem:[#allocation2] sm:$0xff] %v196
    // Predicated region
    $region18: #{tpu_custom_call.1} parent=1 // pred_check
      _
    $region19: #{tpu_custom_call.1} parent=1 // pred_check_branch
      %199 = sbr.rel (0) target = $region21
    $region20: #{tpu_custom_call.1} parent=1 // pred_region
      %s201 = ssub.s32 128, 128
      %202 = vsyncadd [#allocation3], %s201
      %s204 = sshll.u32 [#allocation2], 4
      %s205 = int_to_ptr.vmem [resolvable:$true] %s204
      %207 = dma.vmem_to_hbm [thread:$0]  %s205, 128, %s4, [#allocation3]
    $region21: #{tpu_custom_call.1} parent=1 // pred_fallthru
      _
    // Predicated region
    $region22: #{tpu_custom_call.1} parent=1 // pred_check
      _
    $region23: #{tpu_custom_call.1} parent=1 // pred_check_branch
      %209 = sbr.rel (0) target = $region25
    $region24: #{tpu_custom_call.1} parent=1 // pred_region
      %210 = dma.done [#allocation3], 128
    $region25: #{tpu_custom_call.1} parent=1 // pred_fallthru
      _
    %211 = vsyncpa [#allocation3], 1

// kernel: tpu_custom_call.1
$region0: #{tpu_custom_call.1}
  #allocation0 [shape = 'u32[]', space=smem, size = 0x4, offset = 0x4, fixed_abs, tag = 'smem constant byte address 0x4 - core index']
  #allocation1 [shape = 'u32[144,128]{1,0:T(1,128)}', space=vmem, size = 0x12000, scoped, tag = 'internal scratch']
  %s0 = inlined_call_operand.vmem [shape: f32[8,32], index: 0, kind: input, shape index: {}]
  %s1 = inlined_call_operand.vmem [shape: f32[128,32], index: 1, kind: input, shape index: {}]
  %s2 = inlined_call_operand.vmem [shape: f32[1,128], index: 2, kind: input, shape index: {}]
  %s3 = inlined_call_operand.vmem [shape: f32[1,128], index: 3, kind: input, shape index: {}]
  %s4 = inlined_call_operand.hbm [shape: f32[8,128], index: 4, kind: output, shape index: {}]
  %s5 = sld [smem:[#allocation0]]
  $region26: #{tpu_custom_call.1} parent=0
    _
  %s7 = ssub.s32 1, %s5
  %s8 = scalar_select 0, %s7, %s5
  $region1: #{tpu_custom_call.1} parent=0
    #allocation2 [shape = 'u8[4096]{0}', space=vmem, size = 0x1000, scoped, tag = 'output window, operand 0, single buffered']
    #allocation3 [shape = 's32[1]{0}', space=sflag, size = 0x4, scoped, tag = 'scoped memory for tpu_custom_call.1']
    %9 = vsyncpa [#allocation3], 0
    // Predicated region
    $region2: #{tpu_custom_call.1} parent=1 // pred_check
      _
    $region3: #{tpu_custom_call.1} parent=1 // pred_check_branch
      %11 = sbr.rel (0) target = $region5
    $region4: #{tpu_custom_call.1} parent=1 // pred_region
      _
    $region5: #{tpu_custom_call.1} parent=1 // pred_fallthru
      _
    // Predicated region
    $region6: #{tpu_custom_call.1} parent=1 // pred_check
      _
    $region7: #{tpu_custom_call.1} parent=1 // pred_check_branch
      %13 = sbr.rel (0) target = $region9
    $region8: #{tpu_custom_call.1} parent=1 // pred_region
      _
    $region9: #{tpu_custom_call.1} parent=1 // pred_fallthru
      _
    // Predicated region
    $region10: #{tpu_custom_call.1} parent=1 // pred_check
      _
    $region11: #{tpu_custom_call.1} parent=1 // pred_check_branch
      %15 = sbr.rel (0) target = $region13
    $region12: #{tpu_custom_call.1} parent=1 // pred_region
      _
    $region13: #{tpu_custom_call.1} parent=1 // pred_fallthru
      _
    // Predicated region
    $region14: #{tpu_custom_call.1} parent=1 // pred_check
      _
    $region15: #{tpu_custom_call.1} parent=1 // pred_check_branch
      %17 = sbr.rel (0) target = $region17
    $region16: #{tpu_custom_call.1} parent=1 // pred_region
      _
    $region17: #{tpu_custom_call.1} parent=1 // pred_fallthru
      _
    %v18 = vld [vmem:[%s0] sm:$0xff]
    %v19 = vld [vmem:[%s1] sm:$0xff]
    %v20 = vld [vmem:[%s1 + $0x8] sm:$0xff]
    %v21 = vld [vmem:[%s1 + $0x10] sm:$0xff]
    %v22 = vld [vmem:[%s1 + $0x18] sm:$0xff]
    %v23 = vld [vmem:[%s1 + $0x20] sm:$0xff]
    %v24 = vld [vmem:[%s1 + $0x28] sm:$0xff]
    %v25 = vld [vmem:[%s1 + $0x30] sm:$0xff]
    %v26 = vld [vmem:[%s1 + $0x38] sm:$0xff]
    %v27 = vld [vmem:[%s1 + $0x40] sm:$0xff]
    %v28 = vld [vmem:[%s1 + $0x48] sm:$0xff]
    %v29 = vld [vmem:[%s1 + $0x50] sm:$0xff]
    %v30 = vld [vmem:[%s1 + $0x58] sm:$0xff]
    %v31 = vld [vmem:[%s1 + $0x60] sm:$0xff]
    %v32 = vld [vmem:[%s1 + $0x68] sm:$0xff]
    %v33 = vld [vmem:[%s1 + $0x70] sm:$0xff]
    %v34 = vld [vmem:[%s1 + $0x78] sm:$0xff]
    %v35 = vld [vmem:[%s2] sm:$0x1]
    %v36 = vld [vmem:[%s3] sm:$0x1]
    %vm37 = vcmask 261120
    %v39 = vsel %vm37, %v18, 0
    %v42 = vsel %vm37, %v19, 0
    %v45 = vsel %vm37, %v20, 0
    %v48 = vsel %vm37, %v21, 0
    %v51 = vsel %vm37, %v22, 0
    %v54 = vsel %vm37, %v23, 0
    %v57 = vsel %vm37, %v24, 0
    %v60 = vsel %vm37, %v25, 0
    %v63 = vsel %vm37, %v26, 0
    %v66 = vsel %vm37, %v27, 0
    %v69 = vsel %vm37, %v28, 0
    %v72 = vsel %vm37, %v29, 0
    %v75 = vsel %vm37, %v30, 0
    %v78 = vsel %vm37, %v31, 0
    %v81 = vsel %vm37, %v32, 0
    %v84 = vsel %vm37, %v33, 0
    %v87 = vsel %vm37, %v34, 0
    %89 = vmatprep.subr.mxu0 0.0
    %90 = vmatpush1.xpose.msra.mxu0 %v87
    %91 = vmatprep.subr.mxu0 0.0
    %92 = vmatpush1.xpose.msra.mxu0 %v84
    %93 = vmatprep.subr.mxu0 0.0
    %94 = vmatpush1.xpose.msra.mxu0 %v81
    %95 = vmatprep.subr.mxu0 0.0
    %96 = vmatpush1.xpose.msra.mxu0 %v78
    %97 = vmatprep.subr.mxu0 0.0
    %98 = vmatpush1.xpose.msra.mxu0 %v75
    %99 = vmatprep.subr.mxu0 0.0
    %100 = vmatpush1.xpose.msra.mxu0 %v72
    %101 = vmatprep.subr.mxu0 0.0
    %102 = vmatpush1.xpose.msra.mxu0 %v69
    %103 = vmatprep.subr.mxu0 0.0
    %104 = vmatpush1.xpose.msra.mxu0 %v66
    %105 = vmatprep.subr.mxu0 0.0
    %106 = vmatpush1.xpose.msra.mxu0 %v63
    %107 = vmatprep.subr.mxu0 0.0
    %108 = vmatpush1.xpose.msra.mxu0 %v60
    %109 = vmatprep.subr.mxu0 0.0
    %110 = vmatpush1.xpose.msra.mxu0 %v57
    %111 = vmatprep.subr.mxu0 0.0
    %112 = vmatpush1.xpose.msra.mxu0 %v54
    %113 = vmatprep.subr.mxu0 0.0
    %114 = vmatpush1.xpose.msra.mxu0 %v51
    %115 = vmatprep.subr.mxu0 0.0
    %116 = vmatpush1.xpose.msra.mxu0 %v48
    %117 = vmatprep.subr.mxu0 0.0
    %118 = vmatpush1.xpose.msra.mxu0 %v45
    %119 = vmatprep.subr.mxu0 0.0
    %120 = vmatpush1.xpose.msra.mxu0 %v42
    %121 = vmatprep.subr.mxu0 0.0
    %122 = vmatpush2.xpose.msra.mxu0 0.0
    %123 = vmatprep.subr.mxu0 0.0
    %124 = vmatpush2.xpose.msra.mxu0 0.0
    %125 = vmatprep.subr.mxu0 0.0
    %126 = vmatpush2.xpose.msra.mxu0 0.0
    %127 = vmatprep.subr.mxu0 0.0
    %128 = vmatpush2.xpose.msra.mxu0 0.0
    %129 = vmatprep.subr.mxu0 0.0
    %130 = vmatpush2.xpose.msra.mxu0 0.0
    %131 = vmatprep.subr.mxu0 0.0
    %132 = vmatpush2.xpose.msra.mxu0 0.0
    %133 = vmatprep.subr.mxu0 0.0
    %134 = vmatpush2.xpose.msra.mxu0 0.0
    %135 = vmatprep.subr.mxu0 0.0
    %136 = vmatpush2.xpose.msra.mxu0 0.0
    %137 = vmatprep.subr.mxu0 0.0
    %138 = vmatpush2.xpose.msra.mxu0 0.0
    %139 = vmatprep.subr.mxu0 0.0
    %140 = vmatpush2.xpose.msra.mxu0 0.0
    %141 = vmatprep.subr.mxu0 0.0
    %142 = vmatpush2.xpose.msra.mxu0 0.0
    %143 = vmatprep.subr.mxu0 0.0
    %144 = vmatpush2.xpose.msra.mxu0 0.0
    %145 = vmatprep.subr.mxu0 0.0
    %146 = vmatpush2.xpose.msra.mxu0 0.0
    %147 = vmatprep.subr.mxu0 0.0
    %148 = vmatpush2.xpose.msra.mxu0 0.0
    %149 = vmatprep.subr.mxu0 0.0
    %150 = vmatpush2.xpose.msra.mxu0 0.0
    %151 = vmatprep.subr.mxu0 0.0
    %152 = vmatpush2.xpose.msra.mxu0 0.0
    %153 = vmatprep.mubr.f32.mxu0 0.0
    %154 = vmatmul.mubr.f32.gmra.mxu0 %v39
    %v155 = vpop.f32.mrf.mxu0
    %v156 = vadd.f32 0.0, %v155
    %v157 = vpop.f32.mrf.mxu0
    %158 = vdwg.mxu0
    %v159 = vrot.slane %v156, 4
    %v160 = vadd.f32 %v156, %v159
    %v161 = vrot.slane %v160, 2
    %v162 = vadd.f32 %v160, %v161
    %v163 = vrot.slane %v162, 1
    %v164 = vadd.f32 %v162, %v163
    %v165 = vmul.f32 %v156, %v156
    %v166 = vrot.slane %v165, 4
    %v167 = vadd.f32 %v165, %v166
    %v168 = vrot.slane %v167, 2
    %v169 = vadd.f32 %v167, %v168
    %v170 = vrot.slane %v169, 1
    %v171 = vadd.f32 %v169, %v170
    %v172 = vmul.f32 %v164, 0.125
    %v173 = vmul.f32 %v171, 0.125
    %v174 = vmul.f32 %v172, %v172
    %v175 = vsub.f32 %v173, %v174
    %v176 = vmax.f32 %v175, 0.0
    %v177 = vadd.f32 %v176, 1e-05
    %v178 = vrsqrt.pop %v177
    %v179 = vmul.f32 %v35, %v178
    %v180 = vmul.f32 %v172, %v179
    %v181 = vsub.f32 %v36, %v180
    %v183 = vlaneseq
    %v184 = vshrl.u32 %v183, 7
    %v185 = vsub.s32 0, %v184
    %v186 = vrot.slane %v179, %v185
    %v188 = vmul.f32 %v156, %v186
    %v190 = vlaneseq
    %v191 = vshrl.u32 %v190, 7
    %v192 = vsub.s32 0, %v191
    %v193 = vrot.slane %v181, %v192
    %v195 = vadd.f32 %v188, %v193
    %v196 = vmax.f32 %v195, 0.0
    %197 = vst [vmem:[#allocation2] sm:$0xff] %v196
    // Predicated region
    $region18: #{tpu_custom_call.1} parent=1 // pred_check
      _
    $region19: #{tpu_custom_call.1} parent=1 // pred_check_branch
      %199 = sbr.rel (0) target = $region21
    $region20: #{tpu_custom_call.1} parent=1 // pred_region
      %s201 = ssub.s32 128, 128
      %202 = vsyncadd [#allocation3], %s201
      %s204 = sshll.u32 [#allocation2], 4
      %s205 = int_to_ptr.vmem [resolvable:$true] %s204
      %207 = dma.vmem_to_hbm [thread:$0]  %s205, 128, %s4, [#allocation3]
    $region21: #{tpu_custom_call.1} parent=1 // pred_fallthru
      _
    // Predicated region
    $region22: #{tpu_custom_call.1} parent=1 // pred_check
      _
    $region23: #{tpu_custom_call.1} parent=1 // pred_check_branch
      %209 = sbr.rel (0) target = $region25
    $region24: #{tpu_custom_call.1} parent=1 // pred_region
      %210 = dma.done [#allocation3], 128
    $region25: #{tpu_custom_call.1} parent=1 // pred_fallthru
      _
    %211 = vsyncpa [#allocation3], 1

</llo_original>
